<compile_context>
chip_gen: v5e
topology: v5e:2x2
jax: 0.10.0
libtpu: 0.0.40
codegen_flags: <defaults>
</compile_context>

<pallas_src>
import jax
import jax.numpy as jnp
from jax.experimental import pallas as pl
from jax.experimental.pallas import tpu as pltpu


# ---------------------------------------------------------------------------
# Pallas kernel: all GRU-GCN layers fused, grid iterates over layers
# ---------------------------------------------------------------------------
def fused_gru_gcn_kernel(a_ref, inp_ref, h_ref, wx_ref, wh_ref, whh_ref,
                         bzr_ref, bh_ref, out_ref, xcarry_ref):
    layer = pl.program_id(0)
    n_layers = pl.num_programs(0)

    # Layer 0 input = (padded) inp; later layers read the carried activation.
    @pl.when(layer == 0)
    def _init_carry():
        xcarry_ref[...] = inp_ref[...]

    a = a_ref[...]                       # [N, N]    bf16 (resident)
    x = xcarry_ref[...]                  # [N, Fmax] bf16
    h32 = h_ref[0]                       # [N, H]    f32
    h16 = h32.astype(a.dtype)

    hidden = h32.shape[-1]

    # Per-gate input projections with gate-concatenated weights.
    px = jnp.dot(x, wx_ref[0], preferred_element_type=jnp.float32)    # [N, 3H]
    ph = jnp.dot(h16, wh_ref[0], preferred_element_type=jnp.float32)  # [N, 2H]

    # One A_hat matmul covering both z and r (exploits linearity of A @ .).
    zr_in = (px[:, :2 * hidden] + ph).astype(a.dtype)
    zr = jax.nn.sigmoid(
        jnp.dot(a, zr_in, preferred_element_type=jnp.float32) + bzr_ref[0])
    z = zr[:, :hidden]
    r = zr[:, hidden:]

    # One A_hat matmul for h~.
    rh = (r * h32).astype(a.dtype)
    ph2 = jnp.dot(rh, whh_ref[0], preferred_element_type=jnp.float32)  # [N, H]
    hh_in = (px[:, 2 * hidden:] + ph2).astype(a.dtype)
    h_tilde = jnp.tanh(
        jnp.dot(a, hh_in, preferred_element_type=jnp.float32) + bh_ref[0])

    h_new = z * h32 + (1.0 - z) * h_tilde                              # f32
    out_ref[0] = h_new.astype(out_ref.dtype)

    # Carry this layer's output as the next layer's input. Columns >= H of the
    # carry multiply zero-padded weight rows, so they never need clearing.
    @pl.when(layer + 1 < n_layers)
    def _carry():
        xcarry_ref[:, :hidden] = h_new.astype(xcarry_ref.dtype)


# ---------------------------------------------------------------------------
# Wrapper: single pallas_call for the whole stack of layers
# ---------------------------------------------------------------------------
def graph_gru_gcn_forward(inp, a_hat, h, packed_params):
    """Returns (out, h_out), both [n_layer, N, H] float32."""
    wx_all, wh_all, whh_all, bzr_all, bh_all, f_max = packed_params
    n_layer, num_nodes, hidden = h.shape

    # Pad input features to the stacked weights' row count, cast MXU operands.
    inp16 = jnp.zeros((num_nodes, f_max), jnp.bfloat16)
    inp16 = inp16.at[:, :inp.shape[1]].set(inp.astype(jnp.bfloat16))
    a16 = a_hat.astype(jnp.bfloat16)
    h32 = h.astype(jnp.float32)

    const2 = lambda i: (0, 0)          # layer-invariant, stays VMEM-resident
    layer3 = lambda i: (i, 0, 0)       # per-layer block

    out = pl.pallas_call(
        fused_gru_gcn_kernel,
        out_shape=jax.ShapeDtypeStruct((n_layer, num_nodes, hidden),
                                       jnp.float32),
        grid=(n_layer,),
        in_specs=[
            pl.BlockSpec((num_nodes, num_nodes), const2),          # A_hat
            pl.BlockSpec((num_nodes, f_max), const2),               # inp (pad)
            pl.BlockSpec((1, num_nodes, hidden), layer3),            # h
            pl.BlockSpec((1, f_max, 3 * hidden), layer3),            # Wx cat
            pl.BlockSpec((1, hidden, 2 * hidden), layer3),           # Wh cat
            pl.BlockSpec((1, hidden, hidden), layer3),               # Whh
            pl.BlockSpec((1, 1, 2 * hidden), layer3),                # b_zr
            pl.BlockSpec((1, 1, hidden), layer3),                    # b_h
        ],
        out_specs=pl.BlockSpec((1, num_nodes, hidden), layer3),
        scratch_shapes=[pltpu.VMEM((num_nodes, f_max), jnp.bfloat16)],
        compiler_params=pltpu.CompilerParams(
            dimension_semantics=("arbitrary",),   # layers are sequential
            vmem_limit_bytes=64 * 1024 * 1024),
    )(a16, inp16, h32, wx_all, wh_all, whh_all, bzr_all, bh_all)

    return out, out


# ---------------------------------------------------------------------------
# Plain-JAX glue (built once per graph / parameter set, outside the kernel)
# ---------------------------------------------------------------------------
def normalized_adjacency(edge_index, num_nodes):
    """Dense A_hat = D^-1/2 (A + I) D^-1/2 with A[dst, src].

    Matches torch_geometric GCNConv's gcn_norm defaults:
      * duplicate edges accumulate (scatter-add),
      * self-loops are added "remaining" style (diagonal forced to 1, not 2),
      * degree = in-degree (by destination) including the self-loop.
    """
    row, col = edge_index                      # row = src, col = dst
    a = jnp.zeros((num_nodes, num_nodes), jnp.float32)
    a = a.at[col, row].add(1.0)                # aggregate over incoming edges
    eye = jnp.eye(num_nodes, dtype=bool)
    a = jnp.where(eye, 1.0, a)
    deg = a.sum(axis=1)
    d_inv_sqrt = jnp.where(deg > 0, jax.lax.rsqrt(deg), 0.0)
    return a * d_inv_sqrt[:, None] * d_inv_sqrt[None, :]


def init_params(key, input_size, hidden_size, n_layer):
    """Glorot-style weights, small random biases (GCNConv shapes)."""
    params = []
    for i in range(n_layer):
        fin = input_size if i == 0 else hidden_size
        layer = []
        for in_dim in (fin, hidden_size,       # xz, hz
                       fin, hidden_size,       # xr, hr
                       fin, hidden_size):      # xh, hh
            key, kw, kb = jax.random.split(key, 3)
            scale = jnp.sqrt(6.0 / (in_dim + hidden_size))
            w = jax.random.uniform(kw, (in_dim, hidden_size), jnp.float32,
                                   minval=-scale, maxval=scale)
            b = 0.01 * jax.random.normal(kb, (1, hidden_size), jnp.float32)
            layer.extend([w, b])
        params.append(tuple(layer))
    return params


def pack_params(raw_params, input_size, hidden_size):
    """Concatenate per-gate weights, pre-sum paired biases, pad + stack layers,
    cast MXU operands to bf16.  Do this once; reuse across forward calls."""
    f_max = max(input_size, hidden_size)
    wx_l, wh_l, whh_l, bzr_l, bh_l = [], [], [], [], []
    for p in raw_params:
        (wxz, bxz, whz, bhz, wxr, bxr, whr, bhr, wxh, bxh, whh, bhh) = p
        fin = wxz.shape[0]
        wx = jnp.concatenate([wxz, wxr, wxh], axis=1)            # [Fin, 3H]
        wx_pad = jnp.zeros((f_max, 3 * hidden_size), jnp.float32)
        wx_pad = wx_pad.at[:fin].set(wx)                         # zero rows >= Fin
        wh = jnp.concatenate([whz, whr], axis=1)                 # [H, 2H]
        bzr = jnp.concatenate([bxz + bhz, bxr + bhr], axis=1)    # [1, 2H]
        bh = bxh + bhh                                           # [1, H]
        wx_l.append(wx_pad); wh_l.append(wh); whh_l.append(whh)
        bzr_l.append(bzr); bh_l.append(bh)
    wx_all = jnp.stack(wx_l).astype(jnp.bfloat16)
    wh_all = jnp.stack(wh_l).astype(jnp.bfloat16)
    whh_all = jnp.stack(whh_l).astype(jnp.bfloat16)
    bzr_all = jnp.stack(bzr_l).astype(jnp.float32)
    bh_all = jnp.stack(bh_l).astype(jnp.float32)
    return (wx_all, wh_all, whh_all, bzr_all, bh_all, f_max)


def reference_forward(inp, a_hat, h, raw_params):
    """Pure-JAX f32 reference with the original six-GCN structure."""
    outs = []
    x = inp
    for i in range(h.shape[0]):
        (wxz, bxz, whz, bhz, wxr, bxr, whr, bhr, wxh, bxh, whh, bhh) = \
            raw_params[i]
        gcn = lambda f, w, b: a_hat @ (f @ w) + b
        z = jax.nn.sigmoid(gcn(x, wxz, bxz) + gcn(h[i], whz, bhz))
        r = jax.nn.sigmoid(gcn(x, wxr, bxr) + gcn(h[i], whr, bhr))
        h_t = jnp.tanh(gcn(x, wxh, bxh) + gcn(r * h[i], whh, bhh))
        hi = z * h[i] + (1.0 - z) * h_t
        outs.append(hi)
        x = hi
    out = jnp.stack(outs)
    return out, out


# ---------------------------------------------------------------------------
# Demo
# ---------------------------------------------------------------------------
if __name__ == "__main__":
    num_nodes = 16
    input_size = 8
    hidden_size = 32
    n_layer = 2

    key = jax.random.PRNGKey(0)
    k_x, k_h, k_p = jax.random.split(key, 3)

    inp = jax.random.normal(k_x, (num_nodes, input_size), jnp.float32)
    h0 = jax.random.normal(k_h, (n_layer, num_nodes, hidden_size), jnp.float32)

    # deterministic ring graph (symmetric edges), edge_index shape [2, E]
    src = jnp.arange(num_nodes, dtype=jnp.int32)
    dst = (src + 1) % num_nodes
    edge_index = jnp.stack(
        [jnp.concatenate([src, dst]), jnp.concatenate([dst, src])], axis=0)

    raw_params = init_params(k_p, input_size, hidden_size, n_layer)

    # Build/pack once (static graph + static params -> cached across steps).
    a_hat = normalized_adjacency(edge_index, num_nodes)
    packed = pack_params(raw_params, input_size, hidden_size)

    out, h_out = graph_gru_gcn_forward(inp, a_hat, h0, packed)
    jax.block_until_ready((out, h_out))

    assert out.shape == (n_layer, num_nodes, hidden_size)
    assert h_out.shape == (n_layer, num_nodes, hidden_size)
    assert jnp.all(jnp.isfinite(out))

    # Validate fused/bf16 kernel against the f32 six-GCN reference.
    ref_out, _ = reference_forward(inp, a_hat, h0, raw_params)
    max_err = jnp.max(jnp.abs(out - ref_out))
    assert float(max_err) < 0.1, f"mismatch vs reference: {float(max_err)}"

    print("KERNEL_OK")
</pallas_src>

<mosaic_0001>
module attributes {stable_mosaic.version = 11 : i64} {
  func.func @fused_gru_gcn_kernel(%arg0: i32, %arg1: memref<16x16xbf16, #tpu.memory_space<vmem>>, %arg2: memref<16x32xbf16, #tpu.memory_space<vmem>>, %arg3: memref<1x16x32xf32, #tpu.memory_space<vmem>>, %arg4: memref<1x32x96xbf16, #tpu.memory_space<vmem>>, %arg5: memref<1x32x64xbf16, #tpu.memory_space<vmem>>, %arg6: memref<1x32x32xbf16, #tpu.memory_space<vmem>>, %arg7: memref<1x1x64xf32, #tpu.memory_space<vmem>>, %arg8: memref<1x1x32xf32, #tpu.memory_space<vmem>>, %arg9: memref<1x16x32xf32, #tpu.memory_space<vmem>>, %arg10: memref<16x32xbf16, #tpu.memory_space<vmem>>) attributes {dimension_semantics = [#tpu.dimension_semantics<arbitrary>], iteration_bounds = array<i64: 2>, scalar_prefetch = 0 : i64, scratch_operands = 1 : i64, tpu.core_type = #tpu.core_type<tc>, window_params = [{pipeline_mode = #tpu.pipeline_mode<synchronous>, transform_indices = @transform_0, window_bounds = array<i64: 16, 16>}, {pipeline_mode = #tpu.pipeline_mode<synchronous>, transform_indices = @transform_1, window_bounds = array<i64: 16, 32>}, {transform_indices = @transform_2, window_bounds = array<i64: 1, 16, 32>}, {transform_indices = @transform_3, window_bounds = array<i64: 1, 32, 96>}, {transform_indices = @transform_4, window_bounds = array<i64: 1, 32, 64>}, {transform_indices = @transform_5, window_bounds = array<i64: 1, 32, 32>}, {transform_indices = @transform_6, window_bounds = array<i64: 1, 1, 64>}, {transform_indices = @transform_7, window_bounds = array<i64: 1, 1, 32>}, {transform_indices = @transform_8, window_bounds = array<i64: 1, 16, 32>}]} {
    %c0_i32 = arith.constant 0 : i32
    %0 = arith.cmpi eq, %arg0, %c0_i32 : i32
    %1 = arith.extui %0 : i1 to i32
    %c0_i32_0 = arith.constant 0 : i32
    %2 = arith.cmpi ne, %1, %c0_i32_0 : i32
    scf.if %2 {
      %c0_32 = arith.constant 0 : index
      %c0_33 = arith.constant 0 : index
      %55 = vector.load %arg2[%c0_32, %c0_33] : memref<16x32xbf16, #tpu.memory_space<vmem>>, vector<16x32xbf16>
      %c0_34 = arith.constant 0 : index
      %c0_35 = arith.constant 0 : index
      %56 = vector.load %arg10[%c0_34, %c0_35] : memref<16x32xbf16, #tpu.memory_space<vmem>>, vector<16x32xbf16>
      tpu.vector_store %arg10[%c0_34, %c0_35], %55 {strides = array<i32>} : memref<16x32xbf16, #tpu.memory_space<vmem>>, vector<16x32xbf16>,
    } else {
    }
    %c0 = arith.constant 0 : index
    %c0_1 = arith.constant 0 : index
    %3 = vector.load %arg1[%c0, %c0_1] : memref<16x16xbf16, #tpu.memory_space<vmem>>, vector<16x16xbf16>
    %c0_2 = arith.constant 0 : index
    %c0_3 = arith.constant 0 : index
    %4 = vector.load %arg10[%c0_2, %c0_3] : memref<16x32xbf16, #tpu.memory_space<vmem>>, vector<16x32xbf16>
    %c0_4 = arith.constant 0 : index
    %c0_5 = arith.constant 0 : index
    %c0_6 = arith.constant 0 : index
    %5 = vector.load %arg3[%c0_4, %c0_5, %c0_6] : memref<1x16x32xf32, #tpu.memory_space<vmem>>, vector<1x16x32xf32>
    %6 = vector.shape_cast %5 : vector<1x16x32xf32> to vector<16x32xf32>
    %7 = arith.truncf %6 : vector<16x32xf32> to vector<16x32xbf16>
    %c0_7 = arith.constant 0 : index
    %c0_8 = arith.constant 0 : index
    %c0_9 = arith.constant 0 : index
    %8 = vector.load %arg4[%c0_7, %c0_8, %c0_9] : memref<1x32x96xbf16, #tpu.memory_space<vmem>>, vector<1x32x96xbf16>
    %9 = vector.shape_cast %8 : vector<1x32x96xbf16> to vector<32x96xbf16>
    %cst = arith.constant dense<0.000000e+00> : vector<16x96xf32>
    %10 = tpu.matmul %4, %9, %cst {dimension_numbers = #tpu.dot_dimension_numbers<[1], [0], [0], [1], [0, 0, 1, 1], [], []>} : vector<16x32xbf16>, vector<32x96xbf16>, vector<16x96xf32> -> vector<16x96xf32>
    %c0_10 = arith.constant 0 : index
    %c0_11 = arith.constant 0 : index
    %c0_12 = arith.constant 0 : index
    %11 = vector.load %arg5[%c0_10, %c0_11, %c0_12] : memref<1x32x64xbf16, #tpu.memory_space<vmem>>, vector<1x32x64xbf16>
    %12 = vector.shape_cast %11 : vector<1x32x64xbf16> to vector<32x64xbf16>
    %cst_13 = arith.constant dense<0.000000e+00> : vector<16x64xf32>
    %13 = tpu.matmul %7, %12, %cst_13 {dimension_numbers = #tpu.dot_dimension_numbers<[1], [0], [0], [1], [0, 0, 1, 1], [], []>} : vector<16x32xbf16>, vector<32x64xbf16>, vector<16x64xf32> -> vector<16x64xf32>
    %14 = vector.extract_strided_slice %10 {offsets = [0, 0], sizes = [16, 64], strides = [1, 1]} : vector<16x96xf32> to vector<16x64xf32>
    %15 = arith.addf %14, %13 : vector<16x64xf32>
    %16 = arith.truncf %15 : vector<16x64xf32> to vector<16x64xbf16>
    %cst_14 = arith.constant dense<0.000000e+00> : vector<16x64xf32>
    %17 = tpu.matmul %3, %16, %cst_14 {dimension_numbers = #tpu.dot_dimension_numbers<[1], [0], [0], [1], [0, 0, 1, 1], [], []>} : vector<16x16xbf16>, vector<16x64xbf16>, vector<16x64xf32> -> vector<16x64xf32>
    %c0_15 = arith.constant 0 : index
    %c0_16 = arith.constant 0 : index
    %c0_17 = arith.constant 0 : index
    %18 = vector.load %arg7[%c0_15, %c0_16, %c0_17] : memref<1x1x64xf32, #tpu.memory_space<vmem>>, vector<1x1x64xf32>
    %19 = vector.shape_cast %18 : vector<1x1x64xf32> to vector<1x64xf32>
    %20 = vector.broadcast %19 : vector<1x64xf32> to vector<16x64xf32>
    %21 = arith.addf %17, %20 : vector<16x64xf32>
    %22 = arith.negf %21 : vector<16x64xf32>
    %23 = math.exp %22 : vector<16x64xf32>
    %cst_18 = arith.constant 1.000000e+00 : f32
    %24 = vector.broadcast %cst_18 : f32 to vector<16x64xf32>
    %25 = arith.addf %24, %23 : vector<16x64xf32>
    %26 = arith.divf %24, %25 : vector<16x64xf32>
    %27 = vector.extract_strided_slice %26 {offsets = [0, 0], sizes = [16, 32], strides = [1, 1]} : vector<16x64xf32> to vector<16x32xf32>
    %28 = vector.extract_strided_slice %26 {offsets = [0, 32], sizes = [16, 32], strides = [1, 1]} : vector<16x64xf32> to vector<16x32xf32>
    %29 = arith.mulf %28, %6 : vector<16x32xf32>
    %30 = arith.truncf %29 : vector<16x32xf32> to vector<16x32xbf16>
    %c0_19 = arith.constant 0 : index
    %c0_20 = arith.constant 0 : index
    %c0_21 = arith.constant 0 : index
    %31 = vector.load %arg6[%c0_19, %c0_20, %c0_21] : memref<1x32x32xbf16, #tpu.memory_space<vmem>>, vector<1x32x32xbf16>
    %32 = vector.shape_cast %31 : vector<1x32x32xbf16> to vector<32x32xbf16>
    %cst_22 = arith.constant dense<0.000000e+00> : vector<16x32xf32>
    %33 = tpu.matmul %30, %32, %cst_22 {dimension_numbers = #tpu.dot_dimension_numbers<[1], [0], [0], [1], [0, 0, 1, 1], [], []>} : vector<16x32xbf16>, vector<32x32xbf16>, vector<16x32xf32> -> vector<16x32xf32>
    %34 = vector.extract_strided_slice %10 {offsets = [0, 64], sizes = [16, 32], strides = [1, 1]} : vector<16x96xf32> to vector<16x32xf32>
    %35 = arith.addf %34, %33 : vector<16x32xf32>
    %36 = arith.truncf %35 : vector<16x32xf32> to vector<16x32xbf16>
    %cst_23 = arith.constant dense<0.000000e+00> : vector<16x32xf32>
    %37 = tpu.matmul %3, %36, %cst_23 {dimension_numbers = #tpu.dot_dimension_numbers<[1], [0], [0], [1], [0, 0, 1, 1], [], []>} : vector<16x16xbf16>, vector<16x32xbf16>, vector<16x32xf32> -> vector<16x32xf32>
    %c0_24 = arith.constant 0 : index
    %c0_25 = arith.constant 0 : index
    %c0_26 = arith.constant 0 : index
    %38 = vector.load %arg8[%c0_24, %c0_25, %c0_26] : memref<1x1x32xf32, #tpu.memory_space<vmem>>, vector<1x1x32xf32>
    %39 = vector.shape_cast %38 : vector<1x1x32xf32> to vector<1x32xf32>
    %40 = vector.broadcast %39 : vector<1x32xf32> to vector<16x32xf32>
    %41 = arith.addf %37, %40 : vector<16x32xf32>
    %42 = math.tanh %41 : vector<16x32xf32>
    %43 = arith.mulf %27, %6 : vector<16x32xf32>
    %cst_27 = arith.constant 1.000000e+00 : f32
    %44 = vector.broadcast %cst_27 : f32 to vector<16x32xf32>
    %45 = arith.subf %44, %27 : vector<16x32xf32>
    %46 = arith.mulf %45, %42 : vector<16x32xf32>
    %47 = arith.addf %43, %46 : vector<16x32xf32>
    %c0_28 = arith.constant 0 : index
    %c0_29 = arith.constant 0 : index
    %c0_30 = arith.constant 0 : index
    %48 = vector.load %arg9[%c0_28, %c0_29, %c0_30] : memref<1x16x32xf32, #tpu.memory_space<vmem>>, vector<1x16x32xf32>
    %49 = vector.shape_cast %48 : vector<1x16x32xf32> to vector<16x32xf32>
    %50 = vector.shape_cast %47 : vector<16x32xf32> to vector<1x16x32xf32>
    tpu.vector_store %arg9[%c0_28, %c0_29, %c0_30], %50 {strides = array<i32>} : memref<1x16x32xf32, #tpu.memory_space<vmem>>, vector<1x16x32xf32>,
    %c1_i32 = arith.constant 1 : i32
    %51 = arith.addi %arg0, %c1_i32 : i32
    %c2_i32 = arith.constant 2 : i32
    %52 = arith.cmpi slt, %51, %c2_i32 : i32
    %53 = arith.extui %52 : i1 to i32
    %c0_i32_31 = arith.constant 0 : i32
    %54 = arith.cmpi ne, %53, %c0_i32_31 : i32
    scf.if %54 {
      %55 = arith.truncf %47 : vector<16x32xf32> to vector<16x32xbf16>
      %c0_32 = arith.constant 0 : index
      %c0_33 = arith.constant 0 : index
      %56 = vector.load %arg10[%c0_32, %c0_33] : memref<16x32xbf16, #tpu.memory_space<vmem>>, vector<16x32xbf16>
      tpu.vector_store %arg10[%c0_32, %c0_33], %55 {strides = array<i32>} : memref<16x32xbf16, #tpu.memory_space<vmem>>, vector<16x32xbf16>,
    } else {
    }
    return
  }
  func.func @transform_0(%arg0: i32) -> (i32, i32) {
    %c0_i32 = arith.constant 0 : i32
    %c0_i32_0 = arith.constant 0 : i32
    %c0_i32_1 = arith.constant 0 : i32
    return %c0_i32, %c0_i32_0 : i32, i32
  }
  func.func @transform_1(%arg0: i32) -> (i32, i32) {
    %c0_i32 = arith.constant 0 : i32
    %c0_i32_0 = arith.constant 0 : i32
    %c0_i32_1 = arith.constant 0 : i32
    return %c0_i32, %c0_i32_0 : i32, i32
  }
  func.func @transform_2(%arg0: i32) -> (i32, i32, i32) {
    %c0_i32 = arith.constant 0 : i32
    %c0_i32_0 = arith.constant 0 : i32
    %c0_i32_1 = arith.constant 0 : i32
    return %arg0, %c0_i32, %c0_i32_0 : i32, i32, i32
  }
  func.func @transform_3(%arg0: i32) -> (i32, i32, i32) {
    %c0_i32 = arith.constant 0 : i32
    %c0_i32_0 = arith.constant 0 : i32
    %c0_i32_1 = arith.constant 0 : i32
    return %arg0, %c0_i32, %c0_i32_0 : i32, i32, i32
  }
  func.func @transform_4(%arg0: i32) -> (i32, i32, i32) {
    %c0_i32 = arith.constant 0 : i32
    %c0_i32_0 = arith.constant 0 : i32
    %c0_i32_1 = arith.constant 0 : i32
    return %arg0, %c0_i32, %c0_i32_0 : i32, i32, i32
  }
  func.func @transform_5(%arg0: i32) -> (i32, i32, i32) {
    %c0_i32 = arith.constant 0 : i32
    %c0_i32_0 = arith.constant 0 : i32
    %c0_i32_1 = arith.constant 0 : i32
    return %arg0, %c0_i32, %c0_i32_0 : i32, i32, i32
  }
  func.func @transform_6(%arg0: i32) -> (i32, i32, i32) {
    %c0_i32 = arith.constant 0 : i32
    %c0_i32_0 = arith.constant 0 : i32
    %c0_i32_1 = arith.constant 0 : i32
    return %arg0, %c0_i32, %c0_i32_0 : i32, i32, i32
  }
  func.func @transform_7(%arg0: i32) -> (i32, i32, i32) {
    %c0_i32 = arith.constant 0 : i32
    %c0_i32_0 = arith.constant 0 : i32
    %c0_i32_1 = arith.constant 0 : i32
    return %arg0, %c0_i32, %c0_i32_0 : i32, i32, i32
  }
  func.func @transform_8(%arg0: i32) -> (i32, i32, i32) {
    %c0_i32 = arith.constant 0 : i32
    %c0_i32_0 = arith.constant 0 : i32
    %c0_i32_1 = arith.constant 0 : i32
    return %arg0, %c0_i32, %c0_i32_0 : i32, i32, i32
  }
}

</mosaic_0001>

<llo_original>
// kernel: tpu_custom_call.1
$region0: #{tpu_custom_call.1}
  #allocation0 [shape = 'u32[]', space=smem, size = 0x4, offset = 0x4, fixed_abs, tag = 'smem constant byte address 0x4 - core index']
  #allocation1 [shape = 'u32[72,128]{1,0:T(1,128)}', space=vmem, size = 0x9000, scoped, tag = 'internal scratch']
  #allocation2 [shape = 'bf16[16,32]{1,0:T(8,128)(2,1)}', space=vmem, size = 0x1000, scoped, tag = 'scratch operand']
  %s0 = inlined_call_operand.hbm [shape: bf16[16,16], index: 0, kind: input, shape index: {}]
  %s1 = inlined_call_operand.hbm [shape: bf16[16,32], index: 1, kind: input, shape index: {}]
  %s2 = inlined_call_operand.hbm [shape: f32[2,16,32], index: 2, kind: input, shape index: {}]
  %s3 = inlined_call_operand.hbm [shape: bf16[2,32,96], index: 3, kind: input, shape index: {}]
  %s4 = inlined_call_operand.hbm [shape: bf16[2,32,64], index: 4, kind: input, shape index: {}]
  %s5 = inlined_call_operand.hbm [shape: bf16[2,32,32], index: 5, kind: input, shape index: {}]
  %s6 = inlined_call_operand.vmem [shape: f32[2,1,64], index: 6, kind: input, shape index: {}]
  %s7 = inlined_call_operand.vmem [shape: f32[2,1,32], index: 7, kind: input, shape index: {}]
  %s8 = inlined_call_operand.hbm [shape: f32[2,16,32], index: 8, kind: output, shape index: {}]
  %s9 = sld [smem:[#allocation0]]
  $region97: #{tpu_custom_call.1} parent=0
    _
  %s11 = ssub.s32 1, %s9
  %s12 = scalar_select 0, %s11, %s9
  $region1: #{tpu_custom_call.1} parent=0
    #allocation3 [shape = 'u8[4096]{0}', space=vmem, size = 0x1000, scoped, tag = 'input window, operand 0, single buffered']
    #allocation4 [shape = 's32[2]{0}', space=sflag, size = 0x8, scoped, tag = 'scoped memory for tpu_custom_call.1']
    #allocation5 [shape = 's32[2]{0}', space=sflag, size = 0x8, scoped, tag = 'scoped memory for tpu_custom_call.1']
    #allocation6 [shape = 'u8[4096]{0}', space=vmem, size = 0x1000, scoped, tag = 'input window, operand 1, single buffered']
    #allocation7 [shape = 's32[1]{0}', space=sflag, size = 0x4, scoped, tag = 'scoped memory for tpu_custom_call.1']
    #allocation8 [shape = 'u8[16384]{0}', space=vmem, size = 0x4000, scoped, tag = 'input window, operand 2']
    #allocation9 [shape = 'u8[16384]{0}', space=vmem, size = 0x4000, scoped, tag = 'input window, operand 3']
    #allocation10 [shape = 'u8[16384]{0}', space=vmem, size = 0x4000, scoped, tag = 'input window, operand 4']
    #allocation11 [shape = 'u8[16384]{0}', space=vmem, size = 0x4000, scoped, tag = 'input window, operand 5']
    #allocation12 [shape = 'u8[16384]{0}', space=vmem, size = 0x4000, scoped, tag = 'output window, operand 0']
    %13 = vsyncpa [#allocation4], 0
    %14 = vsyncpa [#allocation7], 0
    %15 = vsyncpa [#allocation5], 0
    %s16 = scalar_lea.sflag [#allocation5], 1
    %17 = vsyncpa %s16, 0
    loop: start=0, step=1, limit=4
    $region2: #{tpu_custom_call.1} parent=1 // loop_pre_header
      _
    $region3: #{tpu_custom_call.1} parent=1 // loop_header
      %s19 = sphi 0, %s23
      %p20 = scmp.ge.s32.totalorder %s19, 4
      %s27 = sphi 0, %s27
      %s29 = sphi 0, %s27
      %s30 = sphi 0, %s29
      %s44 = sphi 0, %s30
      %s48 = sphi 0, %s48
      %s50 = sphi 0, %s48
      %s51 = sphi 0, %s50
      %s65 = sphi 0, %s51
      %s71 = sphi 0, %s73
      %s74 = sphi 0, %s71
      %s75 = sphi 0, %s74
      %s91 = sphi 0, %s75
      %s97 = sphi 0, %s99
      %s100 = sphi 0, %s97
      %s101 = sphi 0, %s100
      %s117 = sphi 0, %s101
      %s123 = sphi 0, %s125
      %s126 = sphi 0, %s123
      %s127 = sphi 0, %s126
      %s143 = sphi 0, %s127
      %s149 = sphi 0, %s151
      %s152 = sphi 0, %s149
      %s153 = sphi 0, %s152
      %s169 = sphi 0, %s153
      %s175 = sphi 0, %s177
      %s178 = sphi 0, %s175
      %s179 = sphi 0, %s178
      %s195 = sphi 0, %s179
      %s201 = sphi 0, %s203
      %s204 = sphi 0, %s201
      %s205 = sphi 0, %s204
      %s221 = sphi 0, %s205
      %s227 = sphi 0, %s229
      %s230 = sphi 0, %s227
      %s231 = sphi 0, %s230
      %s247 = sphi 0, %s231
    $region4: #{tpu_custom_call.1} parent=1 // loop_header_branch
      %22 = sbr.rel (%p20) target = $region8
    $region5: #{tpu_custom_call.1} parent=1 // loop_body
      %s24 = ssub.s32 %s19, 1
      %s25 = ssub.s32 %s19, 2
      %s26 = sadd.s32 %s19, 1
      %s28 = sadd.s32 %s27, 1
      %p31 = scmp.eq.s32.totalorder %s19, 1
      %p32 = scmp.ne.s32.totalorder %s27, %s29
      %p33 = scmp.eq.s32.totalorder %s19, 0
      %p34 = por %p32, %p33
      %p35 = scmp.ne.s32.totalorder %s27, %s29
      %p36 = scmp.eq.s32.totalorder %s24, 1
      %p37 = por %p35, %p36
      %p38 = scmp.ne.s32.totalorder %s29, %s30
      %p39 = scmp.eq.s32.totalorder %s24, 0
      %p40 = por %p38, %p39
      %p41 = scmp.ne.s32.totalorder %s29, %s30
      %p42 = scmp.eq.s32.totalorder %s25, 1
      %p43 = por %p41, %p42
      %p45 = scmp.ne.s32.totalorder %s30, %s44
      %p46 = scmp.eq.s32.totalorder %s25, 0
      %p47 = por %p45, %p46
      %s49 = sadd.s32 %s48, 1
      %p52 = scmp.eq.s32.totalorder %s19, 1
      %p53 = scmp.ne.s32.totalorder %s48, %s50
      %p54 = scmp.eq.s32.totalorder %s19, 0
      %p55 = por %p53, %p54
      %p56 = scmp.ne.s32.totalorder %s48, %s50
      %p57 = scmp.eq.s32.totalorder %s24, 1
      %p58 = por %p56, %p57
      %p59 = scmp.ne.s32.totalorder %s50, %s51
      %p60 = scmp.eq.s32.totalorder %s24, 0
      %p61 = por %p59, %p60
      %p62 = scmp.ne.s32.totalorder %s50, %s51
      %p63 = scmp.eq.s32.totalorder %s25, 1
      %p64 = por %p62, %p63
      %p66 = scmp.ne.s32.totalorder %s51, %s65
      %p67 = scmp.eq.s32.totalorder %s25, 0
      %p68 = por %p66, %p67
      %s69 = ssub.s32 %s19, %s26
      %p70 = scmp.eq.s32.totalorder %s69, 0
      %s72 = sadd.s32 %s71, 1
      %s73 = scalar_select %p70, %s71, %s72
      %p76 = pneg %p70
      %p77 = scmp.eq.s32.totalorder %s19, 1
      %p78 = por %p76, %p77
      %p79 = scmp.ne.s32.totalorder %s71, %s74
      %p80 = scmp.eq.s32.totalorder %s19, 0
      %p81 = por %p79, %p80
      %p82 = scmp.ne.s32.totalorder %s71, %s74
      %p83 = scmp.eq.s32.totalorder %s24, 1
      %p84 = por %p82, %p83
      %p85 = scmp.ne.s32.totalorder %s74, %s75
      %p86 = scmp.eq.s32.totalorder %s24, 0
      %p87 = por %p85, %p86
      %p88 = scmp.ne.s32.totalorder %s74, %s75
      %p89 = scmp.eq.s32.totalorder %s25, 1
      %p90 = por %p88, %p89
      %p92 = scmp.ne.s32.totalorder %s75, %s91
      %p93 = scmp.eq.s32.totalorder %s25, 0
      %p94 = por %p92, %p93
      %s95 = ssub.s32 %s19, %s26
      %p96 = scmp.eq.s32.totalorder %s95, 0
      %s98 = sadd.s32 %s97, 1
      %s99 = scalar_select %p96, %s97, %s98
      %p102 = pneg %p96
      %p103 = scmp.eq.s32.totalorder %s19, 1
      %p104 = por %p102, %p103
      %p105 = scmp.ne.s32.totalorder %s97, %s100
      %p106 = scmp.eq.s32.totalorder %s19, 0
      %p107 = por %p105, %p106
      %p108 = scmp.ne.s32.totalorder %s97, %s100
      %p109 = scmp.eq.s32.totalorder %s24, 1
      %p110 = por %p108, %p109
      %p111 = scmp.ne.s32.totalorder %s100, %s101
      %p112 = scmp.eq.s32.totalorder %s24, 0
      %p113 = por %p111, %p112
      %p114 = scmp.ne.s32.totalorder %s100, %s101
      %p115 = scmp.eq.s32.totalorder %s25, 1
      %p116 = por %p114, %p115
      %p118 = scmp.ne.s32.totalorder %s101, %s117
      %p119 = scmp.eq.s32.totalorder %s25, 0
      %p120 = por %p118, %p119
      %s121 = ssub.s32 %s19, %s26
      %p122 = scmp.eq.s32.totalorder %s121, 0
      %s124 = sadd.s32 %s123, 1
      %s125 = scalar_select %p122, %s123, %s124
      %p128 = pneg %p122
      %p129 = scmp.eq.s32.totalorder %s19, 1
      %p130 = por %p128, %p129
      %p131 = scmp.ne.s32.totalorder %s123, %s126
      %p132 = scmp.eq.s32.totalorder %s19, 0
      %p133 = por %p131, %p132
      %p134 = scmp.ne.s32.totalorder %s123, %s126
      %p135 = scmp.eq.s32.totalorder %s24, 1
      %p136 = por %p134, %p135
      %p137 = scmp.ne.s32.totalorder %s126, %s127
      %p138 = scmp.eq.s32.totalorder %s24, 0
      %p139 = por %p137, %p138
      %p140 = scmp.ne.s32.totalorder %s126, %s127
      %p141 = scmp.eq.s32.totalorder %s25, 1
      %p142 = por %p140, %p141
      %p144 = scmp.ne.s32.totalorder %s127, %s143
      %p145 = scmp.eq.s32.totalorder %s25, 0
      %p146 = por %p144, %p145
      %s147 = ssub.s32 %s19, %s26
      %p148 = scmp.eq.s32.totalorder %s147, 0
      %s150 = sadd.s32 %s149, 1
      %s151 = scalar_select %p148, %s149, %s150
      %p154 = pneg %p148
      %p155 = scmp.eq.s32.totalorder %s19, 1
      %p156 = por %p154, %p155
      %p157 = scmp.ne.s32.totalorder %s149, %s152
      %p158 = scmp.eq.s32.totalorder %s19, 0
      %p159 = por %p157, %p158
      %p160 = scmp.ne.s32.totalorder %s149, %s152
      %p161 = scmp.eq.s32.totalorder %s24, 1
      %p162 = por %p160, %p161
      %p163 = scmp.ne.s32.totalorder %s152, %s153
      %p164 = scmp.eq.s32.totalorder %s24, 0
      %p165 = por %p163, %p164
      %p166 = scmp.ne.s32.totalorder %s152, %s153
      %p167 = scmp.eq.s32.totalorder %s25, 1
      %p168 = por %p166, %p167
      %p170 = scmp.ne.s32.totalorder %s153, %s169
      %p171 = scmp.eq.s32.totalorder %s25, 0
      %p172 = por %p170, %p171
      %s173 = ssub.s32 %s19, %s26
      %p174 = scmp.eq.s32.totalorder %s173, 0
      %s176 = sadd.s32 %s175, 1
      %s177 = scalar_select %p174, %s175, %s176
      %p180 = pneg %p174
      %p181 = scmp.eq.s32.totalorder %s19, 1
      %p182 = por %p180, %p181
      %p183 = scmp.ne.s32.totalorder %s175, %s178
      %p184 = scmp.eq.s32.totalorder %s19, 0
      %p185 = por %p183, %p184
      %p186 = scmp.ne.s32.totalorder %s175, %s178
      %p187 = scmp.eq.s32.totalorder %s24, 1
      %p188 = por %p186, %p187
      %p189 = scmp.ne.s32.totalorder %s178, %s179
      %p190 = scmp.eq.s32.totalorder %s24, 0
      %p191 = por %p189, %p190
      %p192 = scmp.ne.s32.totalorder %s178, %s179
      %p193 = scmp.eq.s32.totalorder %s25, 1
      %p194 = por %p192, %p193
      %p196 = scmp.ne.s32.totalorder %s179, %s195
      %p197 = scmp.eq.s32.totalorder %s25, 0
      %p198 = por %p196, %p197
      %s199 = ssub.s32 %s19, %s26
      %p200 = scmp.eq.s32.totalorder %s199, 0
      %s202 = sadd.s32 %s201, 1
      %s203 = scalar_select %p200, %s201, %s202
      %p206 = pneg %p200
      %p207 = scmp.eq.s32.totalorder %s19, 1
      %p208 = por %p206, %p207
      %p209 = scmp.ne.s32.totalorder %s201, %s204
      %p210 = scmp.eq.s32.totalorder %s19, 0
      %p211 = por %p209, %p210
      %p212 = scmp.ne.s32.totalorder %s201, %s204
      %p213 = scmp.eq.s32.totalorder %s24, 1
      %p214 = por %p212, %p213
      %p215 = scmp.ne.s32.totalorder %s204, %s205
      %p216 = scmp.eq.s32.totalorder %s24, 0
      %p217 = por %p215, %p216
      %p218 = scmp.ne.s32.totalorder %s204, %s205
      %p219 = scmp.eq.s32.totalorder %s25, 1
      %p220 = por %p218, %p219
      %p222 = scmp.ne.s32.totalorder %s205, %s221
      %p223 = scmp.eq.s32.totalorder %s25, 0
      %p224 = por %p222, %p223
      %s225 = ssub.s32 %s19, %s26
      %p226 = scmp.eq.s32.totalorder %s225, 0
      %s228 = sadd.s32 %s227, 1
      %s229 = scalar_select %p226, %s227, %s228
      %p232 = pneg %p226
      %p233 = scmp.eq.s32.totalorder %s19, 1
      %p234 = por %p232, %p233
      %p235 = scmp.ne.s32.totalorder %s227, %s230
      %p236 = scmp.eq.s32.totalorder %s19, 0
      %p237 = por %p235, %p236
      %p238 = scmp.ne.s32.totalorder %s227, %s230
      %p239 = scmp.eq.s32.totalorder %s24, 1
      %p240 = por %p238, %p239
      %p241 = scmp.ne.s32.totalorder %s230, %s231
      %p242 = scmp.eq.s32.totalorder %s24, 0
      %p243 = por %p241, %p242
      %p244 = scmp.ne.s32.totalorder %s230, %s231
      %p245 = scmp.eq.s32.totalorder %s25, 1
      %p246 = por %p244, %p245
      %p248 = scmp.ne.s32.totalorder %s231, %s247
      %p249 = scmp.eq.s32.totalorder %s25, 0
      %p250 = por %p248, %p249
      %p251 = scmp.le.s32.totalorder 1, %s19
      %p252 = scmp.lt.s32.totalorder %s19, 3
      %p253 = pnand %p251, %p252
      %p254 = pneg %p253
      // Predicated region
      $region9: #{tpu_custom_call.1} parent=5 // pred_check
        _
      $region10: #{tpu_custom_call.1} parent=5 // pred_check_branch
        %256 = sbr.rel (%p253) target = $region12
      $region11: #{tpu_custom_call.1} parent=5 // pred_region
        %s257 = ssub.s32 %s19, 1
        // Predicated region
        $region13: #{tpu_custom_call.1} parent=11 // pred_check
          %p258 = pneg %p40
        $region14: #{tpu_custom_call.1} parent=11 // pred_check_branch
          %260 = sbr.rel (%p258) target = $region16
        $region15: #{tpu_custom_call.1} parent=11 // pred_region
          %262 = vsyncadd [#allocation4], 0
          %s263 = sshll.u32 %s0, 4
          %s264 = int_to_ptr.hbm [resolvable:$true] %s263
          %s265 = sshll.u32 [#allocation3], 4
          %s266 = int_to_ptr.vmem [resolvable:$true] %s265
          %271 = dma.hbm_to_vmem [thread:$0]  %s264, 128, %s266, [#allocation4], 64, 64, 4
        $region16: #{tpu_custom_call.1} parent=11 // pred_fallthru
          _
        // Predicated region
        $region17: #{tpu_custom_call.1} parent=11 // pred_check
          %p272 = pneg %p61
        $region18: #{tpu_custom_call.1} parent=11 // pred_check_branch
          %274 = sbr.rel (%p272) target = $region20
        $region19: #{tpu_custom_call.1} parent=11 // pred_region
          %276 = vsyncadd [#allocation7], 0
          %s277 = sshll.u32 %s1, 4
          %s278 = int_to_ptr.hbm [resolvable:$true] %s277
          %s279 = sshll.u32 [#allocation6], 4
          %s280 = int_to_ptr.vmem [resolvable:$true] %s279
          %285 = dma.hbm_to_vmem [thread:$0]  %s278, 128, %s280, [#allocation7], 64, 64, 4
        $region20: #{tpu_custom_call.1} parent=11 // pred_fallthru
          _
      $region12: #{tpu_custom_call.1} parent=5 // pred_fallthru
        _
      %p286 = scmp.lt.s32.totalorder %s19, 2
      // Predicated region
      $region21: #{tpu_custom_call.1} parent=5 // pred_check
        %p287 = pneg %p286
      $region22: #{tpu_custom_call.1} parent=5 // pred_check_branch
        %289 = sbr.rel (%p287) target = $region24
      $region23: #{tpu_custom_call.1} parent=5 // pred_region
        // Predicated region
        $region25: #{tpu_custom_call.1} parent=23 // pred_check
          %p290 = pneg %p81
        $region26: #{tpu_custom_call.1} parent=23 // pred_check_branch
          %292 = sbr.rel (%p290) target = $region28
        $region27: #{tpu_custom_call.1} parent=23 // pred_region
          %s293 = sand.u32 %s19, 1
          %s294 = scalar_lea.sflag [#allocation4], %s293
          %s295 = sand.u32 %s71, 1
          %s296 = smul.addr %s295, 16
          %s297 = scalar_lea.vmem [#allocation8], %s296
          %299 = vsyncadd %s294, 0
          %s300 = smul.addr %s19, 2
          %s301 = smul.addr %s300, 8
          %s302 = scalar_lea.hbm %s2, %s301
          %s303 = sshll.u32 %s302, 4
          %s304 = int_to_ptr.hbm [resolvable:$true] %s303
          %s305 = sshll.u32 %s297, 4
          %s306 = int_to_ptr.vmem [resolvable:$true] %s305
          %311 = dma.hbm_to_vmem [thread:$0]  %s304, 256, %s306, %s294, 128, 128, 8
        $region28: #{tpu_custom_call.1} parent=23 // pred_fallthru
          _
        // Predicated region
        $region29: #{tpu_custom_call.1} parent=23 // pred_check
          %p312 = pneg %p107
        $region30: #{tpu_custom_call.1} parent=23 // pred_check_branch
          %314 = sbr.rel (%p312) target = $region32
        $region31: #{tpu_custom_call.1} parent=23 // pred_region
          %s315 = sand.u32 %s19, 1
          %s316 = scalar_lea.sflag [#allocation4], %s315
          %s317 = sand.u32 %s97, 1
          %s318 = smul.addr %s317, 16
          %s319 = scalar_lea.vmem [#allocation9], %s318
          %321 = vsyncadd %s316, 0
          %s322 = smul.addr %s19, 4
          %s323 = smul.addr %s322, 4
          %s324 = scalar_lea.hbm %s3, %s323
          %s325 = sshll.u32 %s324, 4
          %s326 = int_to_ptr.hbm [resolvable:$true] %s325
          %s327 = sshll.u32 %s319, 4
          %s328 = int_to_ptr.vmem [resolvable:$true] %s327
          %333 = dma.hbm_to_vmem [thread:$0]  %s326, 256, %s328, %s316, 64, 64, 4
        $region32: #{tpu_custom_call.1} parent=23 // pred_fallthru
          _
        // Predicated region
        $region33: #{tpu_custom_call.1} parent=23 // pred_check
          %p334 = pneg %p133
        $region34: #{tpu_custom_call.1} parent=23 // pred_check_branch
          %336 = sbr.rel (%p334) target = $region36
        $region35: #{tpu_custom_call.1} parent=23 // pred_region
          %s337 = sand.u32 %s19, 1
          %s338 = scalar_lea.sflag [#allocation4], %s337
          %s339 = sand.u32 %s123, 1
          %s340 = smul.addr %s339, 16
          %s341 = scalar_lea.vmem [#allocation10], %s340
          %343 = vsyncadd %s338, 0
          %s344 = smul.addr %s19, 4
          %s345 = smul.addr %s344, 4
          %s346 = scalar_lea.hbm %s4, %s345
          %s347 = sshll.u32 %s346, 4
          %s348 = int_to_ptr.hbm [resolvable:$true] %s347
          %s349 = sshll.u32 %s341, 4
          %s350 = int_to_ptr.vmem [resolvable:$true] %s349
          %355 = dma.hbm_to_vmem [thread:$0]  %s348, 256, %s350, %s338, 64, 64, 4
        $region36: #{tpu_custom_call.1} parent=23 // pred_fallthru
          _
        // Predicated region
        $region37: #{tpu_custom_call.1} parent=23 // pred_check
          %p356 = pneg %p159
        $region38: #{tpu_custom_call.1} parent=23 // pred_check_branch
          %358 = sbr.rel (%p356) target = $region40
        $region39: #{tpu_custom_call.1} parent=23 // pred_region
          %s359 = sand.u32 %s19, 1
          %s360 = scalar_lea.sflag [#allocation4], %s359
          %s361 = sand.u32 %s149, 1
          %s362 = smul.addr %s361, 16
          %s363 = scalar_lea.vmem [#allocation11], %s362
          %365 = vsyncadd %s360, 0
          %s366 = smul.addr %s19, 4
          %s367 = smul.addr %s366, 4
          %s368 = scalar_lea.hbm %s5, %s367
          %s369 = sshll.u32 %s368, 4
          %s370 = int_to_ptr.hbm [resolvable:$true] %s369
          %s371 = sshll.u32 %s363, 4
          %s372 = int_to_ptr.vmem [resolvable:$true] %s371
          %377 = dma.hbm_to_vmem [thread:$0]  %s370, 256, %s372, %s360, 64, 64, 4
        $region40: #{tpu_custom_call.1} parent=23 // pred_fallthru
          _
        // Predicated region
        $region41: #{tpu_custom_call.1} parent=23 // pred_check
          %p378 = pneg %p185
        $region42: #{tpu_custom_call.1} parent=23 // pred_check_branch
          %380 = sbr.rel (%p378) target = $region44
        $region43: #{tpu_custom_call.1} parent=23 // pred_region
          %p381 = scmp.lt.s32.totalorder %s19, 1
          %s382 = scalar_select %p381, %s19, 1
          %s383 = scalar_lea.vmem %s6, %s382
        $region44: #{tpu_custom_call.1} parent=23 // pred_fallthru
          _
        // Predicated region
        $region45: #{tpu_custom_call.1} parent=23 // pred_check
          %p384 = pneg %p211
        $region46: #{tpu_custom_call.1} parent=23 // pred_check_branch
          %386 = sbr.rel (%p384) target = $region48
        $region47: #{tpu_custom_call.1} parent=23 // pred_region
          %p387 = scmp.lt.s32.totalorder %s19, 1
          %s388 = scalar_select %p387, %s19, 1
          %s389 = scalar_lea.vmem %s7, %s388
        $region48: #{tpu_custom_call.1} parent=23 // pred_fallthru
          _
      $region24: #{tpu_custom_call.1} parent=5 // pred_fallthru
        _
      %p390 = scmp.le.s32.totalorder 1, %s19
      %p391 = scmp.lt.s32.totalorder %s19, 3
      %p392 = pnand %p390, %p391
      %p393 = pneg %p392
      // Predicated region
      $region49: #{tpu_custom_call.1} parent=5 // pred_check
        _
      $region50: #{tpu_custom_call.1} parent=5 // pred_check_branch
        %395 = sbr.rel (%p392) target = $region52
      $region51: #{tpu_custom_call.1} parent=5 // pred_region
        %s396 = ssub.s32 %s19, 1
        // Predicated region
        $region53: #{tpu_custom_call.1} parent=51 // pred_check
          %p397 = pneg %p40
        $region54: #{tpu_custom_call.1} parent=51 // pred_check_branch
          %399 = sbr.rel (%p397) target = $region56
        $region55: #{tpu_custom_call.1} parent=51 // pred_region
          %401 = dma.done [#allocation4], 128
        $region56: #{tpu_custom_call.1} parent=51 // pred_fallthru
          _
        // Predicated region
        $region57: #{tpu_custom_call.1} parent=51 // pred_check
          %p402 = pneg %p61
        $region58: #{tpu_custom_call.1} parent=51 // pred_check_branch
          %404 = sbr.rel (%p402) target = $region60
        $region59: #{tpu_custom_call.1} parent=51 // pred_region
          %406 = dma.done [#allocation7], 128
        $region60: #{tpu_custom_call.1} parent=51 // pred_fallthru
          _
        %s407 = sand.u32 %s24, 1
        %s408 = scalar_lea.sflag [#allocation4], %s407
        %s409 = sand.u32 %s74, 1
        %s410 = smul.addr %s409, 16
        %s411 = scalar_lea.vmem [#allocation8], %s410
        // Predicated region
        $region61: #{tpu_custom_call.1} parent=51 // pred_check
          %p412 = pneg %p87
        $region62: #{tpu_custom_call.1} parent=51 // pred_check_branch
          %414 = sbr.rel (%p412) target = $region64
        $region63: #{tpu_custom_call.1} parent=51 // pred_region
          %416 = dma.done %s408, 256
        $region64: #{tpu_custom_call.1} parent=51 // pred_fallthru
          _
        %s417 = sand.u32 %s24, 1
        %s418 = scalar_lea.sflag [#allocation4], %s417
        %s419 = sand.u32 %s100, 1
        %s420 = smul.addr %s419, 16
        %s421 = scalar_lea.vmem [#allocation9], %s420
        // Predicated region
        $region65: #{tpu_custom_call.1} parent=51 // pred_check
          %p422 = pneg %p113
        $region66: #{tpu_custom_call.1} parent=51 // pred_check_branch
          %424 = sbr.rel (%p422) target = $region68
        $region67: #{tpu_custom_call.1} parent=51 // pred_region
          %426 = dma.done %s418, 256
        $region68: #{tpu_custom_call.1} parent=51 // pred_fallthru
          _
        %s427 = sand.u32 %s24, 1
        %s428 = scalar_lea.sflag [#allocation4], %s427
        %s429 = sand.u32 %s126, 1
        %s430 = smul.addr %s429, 16
        %s431 = scalar_lea.vmem [#allocation10], %s430
        // Predicated region
        $region69: #{tpu_custom_call.1} parent=51 // pred_check
          %p432 = pneg %p139
        $region70: #{tpu_custom_call.1} parent=51 // pred_check_branch
          %434 = sbr.rel (%p432) target = $region72
        $region71: #{tpu_custom_call.1} parent=51 // pred_region
          %436 = dma.done %s428, 256
        $region72: #{tpu_custom_call.1} parent=51 // pred_fallthru
          _
        %s437 = sand.u32 %s24, 1
        %s438 = scalar_lea.sflag [#allocation4], %s437
        %s439 = sand.u32 %s152, 1
        %s440 = smul.addr %s439, 16
        %s441 = scalar_lea.vmem [#allocation11], %s440
        // Predicated region
        $region73: #{tpu_custom_call.1} parent=51 // pred_check
          %p442 = pneg %p165
        $region74: #{tpu_custom_call.1} parent=51 // pred_check_branch
          %444 = sbr.rel (%p442) target = $region76
        $region75: #{tpu_custom_call.1} parent=51 // pred_region
          %446 = dma.done %s438, 256
        $region76: #{tpu_custom_call.1} parent=51 // pred_fallthru
          _
        %p447 = pneg %p40
        %p448 = pneg %p37
        %p449 = pneg %p61
        %p450 = pneg %p58
        %s451 = sand.u32 %s24, 1
        %s452 = scalar_lea.sflag [#allocation4], %s451
        %s453 = sand.u32 %s74, 1
        %s454 = smul.addr %s453, 16
        %s455 = scalar_lea.vmem [#allocation8], %s454
        %p456 = pneg %p87
        %p457 = pneg %p84
        %s458 = sand.u32 %s24, 1
        %s459 = scalar_lea.sflag [#allocation4], %s458
        %s460 = sand.u32 %s100, 1
        %s461 = smul.addr %s460, 16
        %s462 = scalar_lea.vmem [#allocation9], %s461
        %p463 = pneg %p113
        %p464 = pneg %p110
        %s465 = sand.u32 %s24, 1
        %s466 = scalar_lea.sflag [#allocation4], %s465
        %s467 = sand.u32 %s126, 1
        %s468 = smul.addr %s467, 16
        %s469 = scalar_lea.vmem [#allocation10], %s468
        %p470 = pneg %p139
        %p471 = pneg %p136
        %s472 = sand.u32 %s24, 1
        %s473 = scalar_lea.sflag [#allocation4], %s472
        %s474 = sand.u32 %s152, 1
        %s475 = smul.addr %s474, 16
        %s476 = scalar_lea.vmem [#allocation11], %s475
        %p477 = pneg %p165
        %p478 = pneg %p162
        %p479 = scmp.lt.s32.totalorder %s24, 1
        %s480 = scalar_select %p479, %s24, 1
        %s481 = scalar_lea.vmem %s6, %s480
        %p482 = pneg %p191
        %p483 = pneg %p188
        %p484 = scmp.lt.s32.totalorder %s24, 1
        %s485 = scalar_select %p484, %s24, 1
        %s486 = scalar_lea.vmem %s7, %s485
        %p487 = pneg %p217
        %p488 = pneg %p214
        %p489 = pneg %p243
        %p490 = pneg %p240
        %s491 = sand.u32 %s230, 1
        %s492 = scalar_lea.sflag [#allocation5], %s491
        %s493 = sand.u32 %s230, 1
        %s494 = smul.addr %s493, 16
        %s495 = scalar_lea.vmem [#allocation12], %s494
        %p496 = scmp.lt.s32.totalorder %s24, 1
        %s497 = scalar_select %p496, %s24, 1
        %s498 = scalar_lea.vmem %s6, %s497
        %p499 = scmp.lt.s32.totalorder %s24, 1
        %s500 = scalar_select %p499, %s24, 1
        %s501 = scalar_lea.vmem %s7, %s500
        %p503 = scmp.eq.s32.totalorder %s24, 0
        // Predicated region
        $region77: #{tpu_custom_call.1} parent=51 // pred_check
          %p504 = pneg %p503
        $region78: #{tpu_custom_call.1} parent=51 // pred_check_branch
          %506 = sbr.rel (%p504) target = $region80
        $region79: #{tpu_custom_call.1} parent=51 // pred_region
          %v507 = vld [vmem:[#allocation6] sm:$0xf]
          %v508 = vld [vmem:[#allocation6 + $0x4] sm:$0xf]
          %vm509 = vcmask 257024
          %510 = vst.msk [vmem:[#allocation2] sm:$0xf] %vm509, %v507
          %511 = vst.msk [vmem:[#allocation2 + $0x4] sm:$0xf] %vm509, %v508
        $region80: #{tpu_custom_call.1} parent=51 // pred_fallthru
          _
        %v512 = vld [vmem:[#allocation3] sm:$0xf]
        %v513 = vld [vmem:[#allocation3 + $0x4] sm:$0xf]
        %v514 = vld [vmem:[#allocation2] sm:$0xf]
        %v515 = vld [vmem:[#allocation2 + $0x4] sm:$0xf]
        %v516 = vld [vmem:[%s411] sm:$0xff]
        %v517 = vld [vmem:[%s411 + $0x8] sm:$0xff]
        %v518 = vpack.c.bf16 %v517, %v516
        %v519 = vld [vmem:[%s421] sm:$0xf]
        %v520 = vld [vmem:[%s421 + $0x4] sm:$0xf]
        %v521 = vld [vmem:[%s421 + $0x8] sm:$0xf]
        %v522 = vld [vmem:[%s421 + $0xc] sm:$0xf]
        %v525 = vunpack.c.l.b16 %v514
        %v526 = vunpack.c.l.b16 %v515
        %v527 = vpack.c.b16 %v526, %v525
        %v532 = vunpack.c.l.b16 %v519
        %v533 = vunpack.c.l.b16 %v520
        %v534 = vunpack.c.l.b16 %v521
        %v535 = vunpack.c.l.b16 %v522
        %v536 = vpack.c.b16 %v533, %v532
        %v537 = vpack.c.b16 %v535, %v534
        %vm540 = vcmask 261120
        %v542 = vsel %vm540, %v527, 0
        %544 = vmatpush.bf16.msra.mxu0 0
        %545 = vmatpush.bf16.msra.mxu0 0
        %546 = vmatpush.bf16.msra.mxu0 0
        %547 = vmatpush.bf16.msra.mxu0 0
        %548 = vmatpush.bf16.msra.mxu0 0
        %549 = vmatpush.bf16.msra.mxu0 0
        %550 = vmatpush.bf16.msra.mxu0 %v537
        %551 = vmatpush.bf16.msra.mxu0 %v536
        %552 = vmatmul.bf16.gmra.mxu0 %v542
        %v553 = vpop.f32.mrf.mxu0
        %v554 = vadd.f32 0.0, %v553
        %v555 = vpop.f32.mrf.mxu0
        %v556 = vadd.f32 0.0, %v555
        %557 = vdwg.mxu0
        %v558 = vld [vmem:[%s431] sm:$0xf]
        %v559 = vld [vmem:[%s431 + $0x4] sm:$0xf]
        %v560 = vld [vmem:[%s431 + $0x8] sm:$0xf]
        %v561 = vld [vmem:[%s431 + $0xc] sm:$0xf]
        %v566 = vunpack.c.l.b16 %v558
        %v567 = vunpack.c.l.b16 %v559
        %v568 = vunpack.c.l.b16 %v560
        %v569 = vunpack.c.l.b16 %v561
        %v570 = vpack.c.b16 %v567, %v566
        %v571 = vpack.c.b16 %v569, %v568
        %v575 = vsel %vm540, %v518, 0
        %577 = vmatpush.bf16.msra.mxu0 0
        %578 = vmatpush.bf16.msra.mxu0 0
        %579 = vmatpush.bf16.msra.mxu0 0
        %580 = vmatpush.bf16.msra.mxu0 0
        %581 = vmatpush.bf16.msra.mxu0 0
        %582 = vmatpush.bf16.msra.mxu0 0
        %583 = vmatpush.bf16.msra.mxu0 %v571
        %584 = vmatpush.bf16.msra.mxu0 %v570
        %585 = vmatmul.bf16.gmra.mxu0 %v575
        %v586 = vpop.f32.mrf.mxu0
        %v587 = vadd.f32 0.0, %v586
        %v588 = vpop.f32.mrf.mxu0
        %v589 = vadd.f32 0.0, %v588
        %590 = vdwg.mxu0
        %v591 = vadd.f32 %v554, %v587
        %v592 = vadd.f32 %v556, %v589
        %v593 = vpack.c.bf16 %v592, %v591
        %v594 = vld [vmem:[%s498] sm:$0x1]
        %v596 = vperm.slane %v594, 0
        %v600 = vunpack.c.l.b16 %v512
        %v601 = vunpack.c.l.b16 %v513
        %v602 = vpack.c.b16 %v601, %v600
        %vm603 = vcmask 130048
        %v605 = vsel %vm603, %v602, 0
        %607 = vmatpush.bf16.msra.mxu0 0
        %608 = vmatpush.bf16.msra.mxu0 0
        %609 = vmatpush.bf16.msra.mxu0 0
        %610 = vmatpush.bf16.msra.mxu0 0
        %611 = vmatpush.bf16.msra.mxu0 0
        %612 = vmatpush.bf16.msra.mxu0 0
        %613 = vmatpush.bf16.msra.mxu0 0
        %614 = vmatpush.bf16.msra.mxu0 %v593
        %615 = vmatmul.bf16.gmra.mxu0 %v605
        %v616 = vpop.f32.mrf.mxu0
        %v617 = vadd.f32 %v596, %v616
        %v618 = vpop.f32.mrf.mxu0
        %v619 = vadd.f32 %v596, %v618
        %620 = vdwg.mxu0
        %v621 = vxor.u32 %v617, 2147483648
        %v622 = vxor.u32 %v619, 2147483648
        %v623 = vmul.f32 %v621, 1.442695
        %v624 = vpow.pop %v623
        %v625 = vmul.f32 %v622, 1.442695
        %v626 = vpow.pop %v625
        %v627 = vadd.f32 %v624, 1.0
        %v628 = vadd.f32 %v626, 1.0
        %v629 = vrcp.pop %v627
        %v630 = vmul.f32 %v627, %v629
        %v631 = vsub.f32 1.0, %v630
        %v632 = vmul.f32 %v629, %v631
        %v633 = vadd.f32 %v629, %v632
        %vm634 = vweird.f32 %v627
        %vm635 = vweird.f32 %v629
        %vm636 = vmor %vm634, %vm635
        %v637 = vsel %vm636, %v629, %v633
        %v638 = vand.u32 2147483647, %v627
        %vm639 = vcmp.eq.f32.partialorder %v638, 8.507059e+37
        %v640 = vand.u32 %v627, 2147483648
        %v641 = vor.u32 1.1754944e-38, %v640
        %v642 = vsel %vm639, %v641, %v637
        %v643 = vmul.f32 1.0, %v642
        %v644 = vrcp.pop %v628
        %v645 = vmul.f32 %v628, %v644
        %v646 = vsub.f32 1.0, %v645
        %v647 = vmul.f32 %v644, %v646
        %v648 = vadd.f32 %v644, %v647
        %vm649 = vweird.f32 %v628
        %vm650 = vweird.f32 %v644
        %vm651 = vmor %vm649, %vm650
        %v652 = vsel %vm651, %v644, %v648
        %v653 = vand.u32 2147483647, %v628
        %vm654 = vcmp.eq.f32.partialorder %v653, 8.507059e+37
        %v655 = vand.u32 %v628, 2147483648
        %v656 = vor.u32 1.1754944e-38, %v655
        %v657 = vsel %vm654, %v656, %v652
        %v658 = vmul.f32 1.0, %v657
        %661 = vrot.lane.b32.xlu0 %v516, 32
        %v662 = vpop.permute.xlu0 %661
        %663 = vrot.lane.b32.xlu0 %v517, 32
        %v664 = vpop.permute.xlu0 %663
        %v667 = vmul.f32 %v643, %v662
        %v668 = vmul.f32 %v658, %v664
        %v669 = vpack.c.bf16 %v668, %v667
        %v670 = vld [vmem:[%s441] sm:$0xf]
        %v671 = vld [vmem:[%s441 + $0x4] sm:$0xf]
        %v672 = vld [vmem:[%s441 + $0x8] sm:$0xf]
        %v673 = vld [vmem:[%s441 + $0xc] sm:$0xf]
        %675 = vrot.lane.b32.xlu0 %v669, 96
        %v676 = vpop.permute.xlu0 %675
        %v681 = vunpack.c.l.b16 %v670
        %v682 = vunpack.c.l.b16 %v671
        %v683 = vunpack.c.l.b16 %v672
        %v684 = vunpack.c.l.b16 %v673
        %v685 = vpack.c.b16 %v682, %v681
        %v686 = vpack.c.b16 %v684, %v683
        %v690 = vsel %vm540, %v676, 0
        %692 = vmatpush.bf16.msra.mxu0 0
        %693 = vmatpush.bf16.msra.mxu0 0
        %694 = vmatpush.bf16.msra.mxu0 0
        %695 = vmatpush.bf16.msra.mxu0 0
        %696 = vmatpush.bf16.msra.mxu0 0
        %697 = vmatpush.bf16.msra.mxu0 0
        %698 = vmatpush.bf16.msra.mxu0 %v686
        %699 = vmatpush.bf16.msra.mxu0 %v685
        %700 = vmatmul.bf16.gmra.mxu0 %v690
        %v701 = vpop.f32.mrf.mxu0
        %v702 = vadd.f32 0.0, %v701
        %v703 = vpop.f32.mrf.mxu0
        %v704 = vadd.f32 0.0, %v703
        %705 = vdwg.mxu0
        %708 = vrot.lane.b32.xlu0 %v702, 64
        %v709 = vpop.permute.xlu0 %708
        %710 = vrot.lane.b32.xlu0 %v704, 64
        %v711 = vpop.permute.xlu0 %710
        %v714 = vadd.f32 %v554, %v709
        %v715 = vadd.f32 %v556, %v711
        %v716 = vpack.c.bf16 %v715, %v714
        %v717 = vld [vmem:[%s501] sm:$0x1]
        %v719 = vperm.slane %v717, 0
        %722 = vrot.lane.b32.xlu0 %v716, 64
        %v723 = vpop.permute.xlu0 %722
        %725 = vmatpush.bf16.msra.mxu0 0
        %726 = vmatpush.bf16.msra.mxu0 0
        %727 = vmatpush.bf16.msra.mxu0 0
        %728 = vmatpush.bf16.msra.mxu0 0
        %729 = vmatpush.bf16.msra.mxu0 0
        %730 = vmatpush.bf16.msra.mxu0 0
        %731 = vmatpush.bf16.msra.mxu0 0
        %732 = vmatpush.bf16.msra.mxu0 %v723
        %733 = vmatmul.bf16.gmra.mxu0 %v605
        %v734 = vpop.f32.mrf.mxu0
        %v735 = vadd.f32 %v719, %v734
        %v736 = vpop.f32.mrf.mxu0
        %v737 = vadd.f32 %v719, %v736
        %738 = vdwg.mxu0
        %v739 = vtanh.pop %v735
        %v740 = vtanh.pop %v737
        %v741 = vmul.f32 %v643, %v516
        %v742 = vmul.f32 %v658, %v517
        %v743 = vsub.f32 1.0, %v643
        %v744 = vsub.f32 1.0, %v658
        %v745 = vmul.f32 %v743, %v739
        %v746 = vmul.f32 %v744, %v740
        %v747 = vadd.f32 %v741, %v745
        %v748 = vadd.f32 %v742, %v746
        %749 = vst.msk [vmem:[%s495] sm:$0xff] %vm540, %v747
        %750 = vst.msk [vmem:[%s495 + $0x8] sm:$0xff] %vm540, %v748
        %s751 = sadd.s32 %s24, 1
        %p752 = scmp.lt.s32.totalorder %s751, 2
        // Predicated region
        $region81: #{tpu_custom_call.1} parent=51 // pred_check
          %p753 = pneg %p752
        $region82: #{tpu_custom_call.1} parent=51 // pred_check_branch
          %755 = sbr.rel (%p753) target = $region84
        $region83: #{tpu_custom_call.1} parent=51 // pred_region
          %v756 = vpack.c.bf16 %v747, %v747
          %v757 = vpack.c.bf16 %v748, %v748
          %vm758 = vcmask 257024
          %759 = vst.msk [vmem:[#allocation2] sm:$0xf] %vm758, %v756
          %760 = vst.msk [vmem:[#allocation2 + $0x4] sm:$0xf] %vm758, %v757
        $region84: #{tpu_custom_call.1} parent=51 // pred_fallthru
          _
        %s761 = sand.u32 %s230, 1
        %s762 = scalar_lea.sflag [#allocation5], %s761
        %s763 = sand.u32 %s230, 1
        %s764 = smul.addr %s763, 16
        %s765 = scalar_lea.vmem [#allocation12], %s764
        // Predicated region
        $region85: #{tpu_custom_call.1} parent=51 // pred_check
          %p766 = pneg %p240
        $region86: #{tpu_custom_call.1} parent=51 // pred_check_branch
          %768 = sbr.rel (%p766) target = $region88
        $region87: #{tpu_custom_call.1} parent=51 // pred_region
          %770 = vsyncadd %s762, 0
          %s771 = smul.addr %s24, 2
          %s772 = smul.addr %s771, 8
          %s773 = scalar_lea.hbm %s8, %s772
          %s774 = sshll.u32 %s765, 4
          %s775 = int_to_ptr.vmem [resolvable:$true] %s774
          %s776 = sshll.u32 %s773, 4
          %s777 = int_to_ptr.hbm [resolvable:$true] %s776
          %782 = dma.vmem_to_hbm [thread:$0]  %s775, 256, %s777, %s762, 128, 128, 8
        $region88: #{tpu_custom_call.1} parent=51 // pred_fallthru
          _
      $region52: #{tpu_custom_call.1} parent=5 // pred_fallthru
        _
      %p783 = scmp.le.s32.totalorder 2, %s19
      // Predicated region
      $region89: #{tpu_custom_call.1} parent=5 // pred_check
        %p784 = pneg %p783
      $region90: #{tpu_custom_call.1} parent=5 // pred_check_branch
        %786 = sbr.rel (%p784) target = $region92
      $region91: #{tpu_custom_call.1} parent=5 // pred_region
        %s787 = ssub.s32 %s19, 2
        // Predicated region
        $region93: #{tpu_custom_call.1} parent=91 // pred_check
          %p788 = pneg %p246
        $region94: #{tpu_custom_call.1} parent=91 // pred_check_branch
          %790 = sbr.rel (%p788) target = $region96
        $region95: #{tpu_custom_call.1} parent=91 // pred_region
          %s791 = sand.u32 %s231, 1
          %s792 = scalar_lea.sflag [#allocation5], %s791
          %s793 = sand.u32 %s231, 1
          %s794 = smul.addr %s793, 16
          %s795 = scalar_lea.vmem [#allocation12], %s794
          %797 = dma.done %s792, 256
        $region96: #{tpu_custom_call.1} parent=91 // pred_fallthru
          _
      $region92: #{tpu_custom_call.1} parent=5 // pred_fallthru
        _
    $region6: #{tpu_custom_call.1} parent=1 // loop_footer
      %s23 = sadd.s32 1, %s19
    $region7: #{tpu_custom_call.1} parent=1 // loop_footer_branch
      %18 = sbr.rel target = $region3
    $region8: #{tpu_custom_call.1} parent=1 // loop_exit
      _
    %798 = vsyncpa [#allocation4], 1
    %s799 = scalar_lea.sflag [#allocation4], 1
    %800 = vsyncpa %s799, 1
    %801 = vsyncpa [#allocation7], 1
    %802 = vsyncpa [#allocation5], 1
    %s803 = scalar_lea.sflag [#allocation5], 1
    %804 = vsyncpa %s803, 1

</llo_original>
